<compile_context>
chip_gen: v6e
topology: v6e:2x2x1
jax: 0.10.0
libtpu: 0.0.40
codegen_flags: <defaults>
</compile_context>

<pallas_src>
import functools

import jax
import jax.numpy as jnp
from jax.experimental import pallas as pl
from jax.experimental.pallas import tpu as pltpu


def _cdiv(a, b):
    return -(-a // b)


def _round_up(a, b):
    return _cdiv(a, b) * b


def edge_mlp_kernel(x_ref, w1t_ref, b1_ref, w2t_ref, b2_ref, o_ref,
                    *, resid_start, resid_size):
    """One lane-tile of the transposed edge MLP.

    x_ref   : (f_in, TE)      f32   -- cat([src, dest, edge_attr], 1)^T tile, E on lanes
    w1t_ref : (hid, f_in)     compute dtype (W1^T, resident in VMEM)
    b1_ref  : (hid, 1)        f32
    w2t_ref : (edge_out, hid) compute dtype (W2^T, resident)
    b2_ref  : (edge_out, 1)   f32
    o_ref   : (edge_out, TE)  f32
    """
    x = x_ref[...]                                    # f32, DMA'd once per tile
    xc = x.astype(w1t_ref.dtype)                      # cast only for the MXU operand
    h = jnp.dot(w1t_ref[...], xc,
                preferred_element_type=jnp.float32) + b1_ref[...]
    h = jnp.maximum(h, 0.0)                           # ReLU in f32 on the VPU
    y = jnp.dot(w2t_ref[...], h.astype(w2t_ref.dtype),
                preferred_element_type=jnp.float32) + b2_ref[...]
    # Residual: exact f32 edge_attr rows of the same (already loaded) tile.
    edge_rows = x_ref[resid_start:resid_start + resid_size, :]
    o_ref[...] = y + edge_rows


def _choose_tile_e(E, *, max_tile=8192, min_steps=4):
    """Lane-axis tile: multiple of 128; aim for >= min_steps grid steps (>= 2 per
    v7x TensorCore) when E allows; cap so the double-buffered footprint stays small."""
    target = _round_up(max(1, _cdiv(E, min_steps)), 128)
    return max(128, min(max_tile, target))


def _vmem_limit_bytes(tile_e, f_in, hid, edge_out):
    """Padded, double-buffered VMEM footprint with headroom.
    Sized against the smallest budgets (v5e 16 MiB scoped, v7x 32 MiB scoped / 64 MiB phys)."""
    p8 = lambda n: _round_up(n, 8)
    in_blk = p8(f_in) * tile_e * 4                    # x^T tile, f32 (sublane-padded)
    out_blk = p8(edge_out) * tile_e * 4               # y^T tile, f32
    weights = (_round_up(hid, 16) * _round_up(f_in, 128) * 4       # W1^T (<= f32)
               + _round_up(edge_out, 16) * _round_up(hid, 128) * 4  # W2^T
               + p8(hid) * 128 * 4 + p8(edge_out) * 128 * 4)        # biases
    total = 2 * (in_blk + out_blk + weights)          # double buffering
    return int(min(100 << 20, max(8 << 20, 2 * total)))


def edge_model_forward(src, dest, edge_attr, w1, b1, w2, b2,
                       *, tile_e=None, compute_dtype=jnp.bfloat16):
    """EdgeModel.forward (residuals=True, norm=False) via a Pallas TPU kernel.

    Weights are stored as (in_features, out_features), i.e. the math is x @ W + b
    (equivalent to PyTorch's x @ W_pt.T + b).
    """
    E, node_in = src.shape
    edge_in = edge_attr.shape[1]
    f_in, hid = w1.shape
    edge_out = w2.shape[1]
    assert f_in == 2 * node_in + edge_in
    assert edge_out == edge_in, "residuals=True requires edge_out == edge_in"

    if tile_e is None:
        tile_e = _choose_tile_e(E)
    assert tile_e % 128 == 0, "lane-axis tile must be a multiple of 128"

    grid = (pl.cdiv(E, tile_e),)                      # partial last block handled by Pallas

    # Lane-dense layout plumbing: one fused XLA pass builds x^T with E on the lane axis.
    # Kept f32 so the in-kernel residual add is exact (bf16 cast happens in-kernel).
    x_t = jnp.concatenate([src, dest, edge_attr], axis=1).T.astype(jnp.float32)

    w1t = w1.T.astype(compute_dtype)                  # (hid, f_in), resident
    w2t = w2.T.astype(compute_dtype)                  # (edge_out, hid), resident
    b1c = b1.reshape(hid, 1).astype(jnp.float32)
    b2c = b2.reshape(edge_out, 1).astype(jnp.float32)

    kernel = functools.partial(edge_mlp_kernel,
                               resid_start=2 * node_in, resid_size=edge_in)

    def resident(r, c):                               # weights stay resident in VMEM
        return pl.BlockSpec((r, c), lambda i: (0, 0))

    flops = 2 * E * (f_in * hid + hid * edge_out)
    useful_bytes = 4 * E * (f_in + edge_out) + 4 * (f_in * hid + hid * edge_out + hid + edge_out)

    out_t = pl.pallas_call(
        kernel,
        out_shape=jax.ShapeDtypeStruct((edge_out, E), jnp.float32),
        grid_spec=pltpu.PrefetchScalarGridSpec(
            num_scalar_prefetch=0,
            grid=grid,
            in_specs=[
                pl.BlockSpec((f_in, tile_e), lambda i: (0, i)),   # x^T tile (E on lanes)
                resident(hid, f_in),                              # W1^T
                resident(hid, 1),                                 # b1
                resident(edge_out, hid),                          # W2^T
                resident(edge_out, 1),                            # b2
            ],
            out_specs=pl.BlockSpec((edge_out, tile_e), lambda i: (0, i)),
        ),
        compiler_params=pltpu.CompilerParams(
            dimension_semantics=("parallel",),
            vmem_limit_bytes=_vmem_limit_bytes(tile_e, f_in, hid, edge_out)),
        cost_estimate=pl.CostEstimate(flops=flops, transcendentals=0,
                                      bytes_accessed=useful_bytes),
    )(x_t, w1t, b1c, w2t, b2c)

    return out_t.T                                    # back to PyTorch's (E, edge_out)


# ----------------------------- references -----------------------------------

def reference_forward_f32(src, dest, edge_attr, w1, b1, w2, b2):
    """Full-f32 reference (PyTorch semantics)."""
    hp = jax.lax.Precision.HIGHEST
    x = jnp.concatenate([src, dest, edge_attr], axis=1)
    h = jnp.maximum(jnp.dot(x, w1, precision=hp) + b1[None, :], 0.0)
    return jnp.dot(h, w2, precision=hp) + b2[None, :] + edge_attr


def reference_forward_matched(src, dest, edge_attr, w1, b1, w2, b2,
                              compute_dtype=jnp.bfloat16):
    """Mirrors the kernel's bf16-matmul / f32-accumulate / f32-residual pipeline."""
    x = jnp.concatenate([src, dest, edge_attr], axis=1).astype(compute_dtype)
    h = jnp.dot(x, w1.astype(compute_dtype),
                preferred_element_type=jnp.float32) + b1[None, :]
    h = jnp.maximum(h, 0.0)
    y = jnp.dot(h.astype(compute_dtype), w2.astype(compute_dtype),
                preferred_element_type=jnp.float32) + b2[None, :]
    return y + edge_attr                              # residual in exact f32


if __name__ == "__main__":
    # Small shapes consistent with the module:
    #   node_in = 4, edge_in = edge_out = 4, hid_channels = 32, E = 300 edges.
    # E is NOT a multiple of the 128-lane tile (exercises the clipped final block)
    # and gives a 3-step grid with tile_e = 128.
    node_in, edge_in, edge_out, hid = 4, 4, 4, 32
    E = 300
    f_in = 2 * node_in + edge_in

    key = jax.random.PRNGKey(0)
    k_src, k_dst, k_edge, k_w1, k_b1, k_w2, k_b2 = jax.random.split(key, 7)

    src = jax.random.normal(k_src, (E, node_in), dtype=jnp.float32)
    dest = jax.random.normal(k_dst, (E, node_in), dtype=jnp.float32)
    edge_attr = jax.random.normal(k_edge, (E, edge_in), dtype=jnp.float32)

    # Deterministic synthetic parameters, stored as (in, out).
    w1 = jax.random.normal(k_w1, (f_in, hid), dtype=jnp.float32) * 0.1
    b1 = jax.random.normal(k_b1, (hid,), dtype=jnp.float32) * 0.01
    w2 = jax.random.normal(k_w2, (hid, edge_out), dtype=jnp.float32) * 0.1
    b2 = jax.random.normal(k_b2, (edge_out,), dtype=jnp.float32) * 0.01

    fwd = jax.jit(edge_model_forward, static_argnames=("tile_e", "compute_dtype"))

    # Default (bf16-MXU, f32-accumulate) path.
    out = jax.block_until_ready(fwd(src, dest, edge_attr, w1, b1, w2, b2))
    assert out.shape == (E, edge_out)

    ref_bf16 = reference_forward_matched(src, dest, edge_attr, w1, b1, w2, b2)
    ref_f32 = reference_forward_f32(src, dest, edge_attr, w1, b1, w2, b2)
    assert jnp.allclose(out, ref_bf16, atol=2e-3, rtol=2e-3), \
        float(jnp.max(jnp.abs(out - ref_bf16)))
    assert jnp.allclose(out, ref_f32, atol=5e-2, rtol=5e-2), \
        float(jnp.max(jnp.abs(out - ref_f32)))

    # Full-f32 compute path (tighter check against the f32 reference).
    out32 = jax.block_until_ready(
        fwd(src, dest, edge_attr, w1, b1, w2, b2, compute_dtype=jnp.float32))
    assert jnp.allclose(out32, ref_f32, atol=2e-2, rtol=2e-2), \
        float(jnp.max(jnp.abs(out32 - ref_f32)))

    print("KERNEL_OK")
</pallas_src>

<mosaic_0001>
module attributes {stable_mosaic.version = 11 : i64} {
  func.func @edge_mlp_kernel(%arg0: i32, %arg1: memref<12x128xf32, #tpu.memory_space<vmem>>, %arg2: memref<32x12xbf16, #tpu.memory_space<vmem>>, %arg3: memref<32x1xf32, #tpu.memory_space<vmem>>, %arg4: memref<4x32xbf16, #tpu.memory_space<vmem>>, %arg5: memref<4x1xf32, #tpu.memory_space<vmem>>, %arg6: memref<4x128xf32, #tpu.memory_space<vmem>>) attributes {dimension_semantics = [#tpu.dimension_semantics<parallel>], iteration_bounds = array<i64: 3>, scalar_prefetch = 0 : i64, scratch_operands = 0 : i64, tpu.core_type = #tpu.core_type<tc>, window_params = [{transform_indices = @transform_0, window_bounds = array<i64: 12, 128>}, {pipeline_mode = #tpu.pipeline_mode<synchronous>, transform_indices = @transform_1, window_bounds = array<i64: 32, 12>}, {pipeline_mode = #tpu.pipeline_mode<synchronous>, transform_indices = @transform_2, window_bounds = array<i64: 32, 1>}, {pipeline_mode = #tpu.pipeline_mode<synchronous>, transform_indices = @transform_3, window_bounds = array<i64: 4, 32>}, {pipeline_mode = #tpu.pipeline_mode<synchronous>, transform_indices = @transform_4, window_bounds = array<i64: 4, 1>}, {transform_indices = @transform_5, window_bounds = array<i64: 4, 128>}]} {
    %c0 = arith.constant 0 : index
    %c0_0 = arith.constant 0 : index
    %0 = vector.load %arg1[%c0, %c0_0] : memref<12x128xf32, #tpu.memory_space<vmem>>, vector<12x128xf32>
    %1 = arith.truncf %0 : vector<12x128xf32> to vector<12x128xbf16>
    %c0_1 = arith.constant 0 : index
    %c0_2 = arith.constant 0 : index
    %2 = vector.load %arg2[%c0_1, %c0_2] : memref<32x12xbf16, #tpu.memory_space<vmem>>, vector<32x12xbf16>
    %cst = arith.constant dense<0.000000e+00> : vector<32x128xf32>
    %3 = tpu.matmul %2, %1, %cst {dimension_numbers = #tpu.dot_dimension_numbers<[1], [0], [0], [1], [0, 0, 1, 1], [], []>} : vector<32x12xbf16>, vector<12x128xbf16>, vector<32x128xf32> -> vector<32x128xf32>
    %c0_3 = arith.constant 0 : index
    %c0_4 = arith.constant 0 : index
    %4 = vector.load %arg3[%c0_3, %c0_4] : memref<32x1xf32, #tpu.memory_space<vmem>>, vector<32x1xf32>
    %5 = vector.broadcast %4 : vector<32x1xf32> to vector<32x128xf32>
    %6 = arith.addf %3, %5 : vector<32x128xf32>
    %cst_5 = arith.constant 0.000000e+00 : f32
    %7 = vector.broadcast %cst_5 : f32 to vector<32x128xf32>
    %8 = arith.maximumf %6, %7 : vector<32x128xf32>
    %c0_6 = arith.constant 0 : index
    %c0_7 = arith.constant 0 : index
    %9 = vector.load %arg4[%c0_6, %c0_7] : memref<4x32xbf16, #tpu.memory_space<vmem>>, vector<4x32xbf16>
    %10 = arith.truncf %8 : vector<32x128xf32> to vector<32x128xbf16>
    %cst_8 = arith.constant dense<0.000000e+00> : vector<4x128xf32>
    %11 = tpu.matmul %9, %10, %cst_8 {dimension_numbers = #tpu.dot_dimension_numbers<[1], [0], [0], [1], [0, 0, 1, 1], [], []>} : vector<4x32xbf16>, vector<32x128xbf16>, vector<4x128xf32> -> vector<4x128xf32>
    %c0_9 = arith.constant 0 : index
    %c0_10 = arith.constant 0 : index
    %12 = vector.load %arg5[%c0_9, %c0_10] : memref<4x1xf32, #tpu.memory_space<vmem>>, vector<4x1xf32>
    %13 = vector.broadcast %12 : vector<4x1xf32> to vector<4x128xf32>
    %14 = arith.addf %11, %13 : vector<4x128xf32>
    %c8 = arith.constant 8 : index
    %c0_11 = arith.constant 0 : index
    %15 = vector.load %arg1[%c8, %c0_11] : memref<12x128xf32, #tpu.memory_space<vmem>>, vector<4x128xf32>
    %16 = arith.addf %14, %15 : vector<4x128xf32>
    %c0_12 = arith.constant 0 : index
    %c0_13 = arith.constant 0 : index
    %17 = vector.load %arg6[%c0_12, %c0_13] : memref<4x128xf32, #tpu.memory_space<vmem>>, vector<4x128xf32>
    tpu.vector_store %arg6[%c0_12, %c0_13], %16 {strides = array<i32>} : memref<4x128xf32, #tpu.memory_space<vmem>>, vector<4x128xf32>,
    return
  }
  func.func @transform_0(%arg0: i32) -> (i32, i32) {
    %c0_i32 = arith.constant 0 : i32
    %c0_i32_0 = arith.constant 0 : i32
    return %c0_i32, %arg0 : i32, i32
  }
  func.func @transform_1(%arg0: i32) -> (i32, i32) {
    %c0_i32 = arith.constant 0 : i32
    %c0_i32_0 = arith.constant 0 : i32
    %c0_i32_1 = arith.constant 0 : i32
    return %c0_i32, %c0_i32_0 : i32, i32
  }
  func.func @transform_2(%arg0: i32) -> (i32, i32) {
    %c0_i32 = arith.constant 0 : i32
    %c0_i32_0 = arith.constant 0 : i32
    %c0_i32_1 = arith.constant 0 : i32
    return %c0_i32, %c0_i32_0 : i32, i32
  }
  func.func @transform_3(%arg0: i32) -> (i32, i32) {
    %c0_i32 = arith.constant 0 : i32
    %c0_i32_0 = arith.constant 0 : i32
    %c0_i32_1 = arith.constant 0 : i32
    return %c0_i32, %c0_i32_0 : i32, i32
  }
  func.func @transform_4(%arg0: i32) -> (i32, i32) {
    %c0_i32 = arith.constant 0 : i32
    %c0_i32_0 = arith.constant 0 : i32
    %c0_i32_1 = arith.constant 0 : i32
    return %c0_i32, %c0_i32_0 : i32, i32
  }
  func.func @transform_5(%arg0: i32) -> (i32, i32) {
    %c0_i32 = arith.constant 0 : i32
    %c0_i32_0 = arith.constant 0 : i32
    return %c0_i32, %arg0 : i32, i32
  }
}

</mosaic_0001>

<llo_original>
// kernel: edge_model_forward.1
$region0: #{edge_model_forward.1}
  #allocation0 [shape = 'u32[]', space=smem, size = 0x4, offset = 0x4, fixed_abs, tag = 'smem constant byte address 0x4 - core index']
  #allocation1 [shape = 'u32[144,128]{1,0:T(1,128)}', space=vmem, size = 0x12000, scoped, tag = 'internal scratch']
  %s0 = inlined_call_operand.vmem [shape: f32[12,300], index: 0, kind: input, shape index: {}]
  %s1 = inlined_call_operand.vmem [shape: bf16[32,12], index: 1, kind: input, shape index: {}]
  %s2 = inlined_call_operand.vmem [shape: f32[32,1], index: 2, kind: input, shape index: {}]
  %s3 = inlined_call_operand.vmem [shape: bf16[4,32], index: 3, kind: input, shape index: {}]
  %s4 = inlined_call_operand.vmem [shape: f32[4,1], index: 4, kind: input, shape index: {}]
  %s5 = inlined_call_operand.hbm [shape: f32[4,300], index: 5, kind: output, shape index: {}]
  %s6 = sld [smem:[#allocation0]]
  $region91: #{edge_model_forward.1} parent=0
    _
  %s8 = ssub.s32 1, %s6
  %s9 = scalar_select 0, %s8, %s6
  $region1: #{edge_model_forward.1} parent=0
    #allocation2 [shape = 'u8[16384]{0}', space=vmem, size = 0x4000, scoped, tag = 'input window, operand 0']
    #allocation3 [shape = 'u8[4096]{0}', space=vmem, size = 0x1000, scoped, tag = 'output window, operand 0']
    #allocation4 [shape = 's32[2]{0}', space=sflag, size = 0x8, scoped, tag = 'scoped memory for edge_model_forward.1']
    %10 = vsyncpa [#allocation4], 0
    %s11 = scalar_lea.sflag [#allocation4], 1
    %12 = vsyncpa %s11, 0
    loop: start=0, step=1, limit=5
    $region2: #{edge_model_forward.1} parent=1 // loop_pre_header
      _
    $region3: #{edge_model_forward.1} parent=1 // loop_header
      %s14 = sphi 0, %s18
      %p15 = scmp.ge.s32.totalorder %s14, 5
      %s24 = sphi 0, %s26
      %s27 = sphi 0, %s24
      %s28 = sphi 0, %s27
      %s44 = sphi 0, %s28
      %s48 = sphi 0, %s48
      %s50 = sphi 0, %s48
      %s51 = sphi 0, %s50
      %s65 = sphi 0, %s51
      %s69 = sphi 0, %s69
      %s71 = sphi 0, %s69
      %s72 = sphi 0, %s71
      %s86 = sphi 0, %s72
      %s90 = sphi 0, %s90
      %s92 = sphi 0, %s90
      %s93 = sphi 0, %s92
      %s107 = sphi 0, %s93
      %s111 = sphi 0, %s111
      %s113 = sphi 0, %s111
      %s114 = sphi 0, %s113
      %s128 = sphi 0, %s114
      %s134 = sphi 0, %s136
      %s137 = sphi 0, %s134
      %s138 = sphi 0, %s137
      %s154 = sphi 0, %s138
    $region4: #{edge_model_forward.1} parent=1 // loop_header_branch
      %17 = sbr.rel (%p15) target = $region8
    $region5: #{edge_model_forward.1} parent=1 // loop_body
      %s19 = ssub.s32 %s14, 1
      %s20 = ssub.s32 %s14, 2
      %s21 = sadd.s32 %s14, 1
      %s22 = ssub.s32 %s14, %s21
      %p23 = scmp.eq.s32.totalorder %s22, 0
      %s25 = sadd.s32 %s24, 1
      %s26 = scalar_select %p23, %s24, %s25
      %p29 = pneg %p23
      %p30 = scmp.eq.s32.totalorder %s14, 2
      %p31 = por %p29, %p30
      %p32 = scmp.ne.s32.totalorder %s24, %s27
      %p33 = scmp.eq.s32.totalorder %s14, 0
      %p34 = por %p32, %p33
      %p35 = scmp.ne.s32.totalorder %s24, %s27
      %p36 = scmp.eq.s32.totalorder %s19, 2
      %p37 = por %p35, %p36
      %p38 = scmp.ne.s32.totalorder %s27, %s28
      %p39 = scmp.eq.s32.totalorder %s19, 0
      %p40 = por %p38, %p39
      %p41 = scmp.ne.s32.totalorder %s27, %s28
      %p42 = scmp.eq.s32.totalorder %s20, 2
      %p43 = por %p41, %p42
      %p45 = scmp.ne.s32.totalorder %s28, %s44
      %p46 = scmp.eq.s32.totalorder %s20, 0
      %p47 = por %p45, %p46
      %s49 = sadd.s32 %s48, 1
      %p52 = scmp.eq.s32.totalorder %s14, 2
      %p53 = scmp.ne.s32.totalorder %s48, %s50
      %p54 = scmp.eq.s32.totalorder %s14, 0
      %p55 = por %p53, %p54
      %p56 = scmp.ne.s32.totalorder %s48, %s50
      %p57 = scmp.eq.s32.totalorder %s19, 2
      %p58 = por %p56, %p57
      %p59 = scmp.ne.s32.totalorder %s50, %s51
      %p60 = scmp.eq.s32.totalorder %s19, 0
      %p61 = por %p59, %p60
      %p62 = scmp.ne.s32.totalorder %s50, %s51
      %p63 = scmp.eq.s32.totalorder %s20, 2
      %p64 = por %p62, %p63
      %p66 = scmp.ne.s32.totalorder %s51, %s65
      %p67 = scmp.eq.s32.totalorder %s20, 0
      %p68 = por %p66, %p67
      %s70 = sadd.s32 %s69, 1
      %p73 = scmp.eq.s32.totalorder %s14, 2
      %p74 = scmp.ne.s32.totalorder %s69, %s71
      %p75 = scmp.eq.s32.totalorder %s14, 0
      %p76 = por %p74, %p75
      %p77 = scmp.ne.s32.totalorder %s69, %s71
      %p78 = scmp.eq.s32.totalorder %s19, 2
      %p79 = por %p77, %p78
      %p80 = scmp.ne.s32.totalorder %s71, %s72
      %p81 = scmp.eq.s32.totalorder %s19, 0
      %p82 = por %p80, %p81
      %p83 = scmp.ne.s32.totalorder %s71, %s72
      %p84 = scmp.eq.s32.totalorder %s20, 2
      %p85 = por %p83, %p84
      %p87 = scmp.ne.s32.totalorder %s72, %s86
      %p88 = scmp.eq.s32.totalorder %s20, 0
      %p89 = por %p87, %p88
      %s91 = sadd.s32 %s90, 1
      %p94 = scmp.eq.s32.totalorder %s14, 2
      %p95 = scmp.ne.s32.totalorder %s90, %s92
      %p96 = scmp.eq.s32.totalorder %s14, 0
      %p97 = por %p95, %p96
      %p98 = scmp.ne.s32.totalorder %s90, %s92
      %p99 = scmp.eq.s32.totalorder %s19, 2
      %p100 = por %p98, %p99
      %p101 = scmp.ne.s32.totalorder %s92, %s93
      %p102 = scmp.eq.s32.totalorder %s19, 0
      %p103 = por %p101, %p102
      %p104 = scmp.ne.s32.totalorder %s92, %s93
      %p105 = scmp.eq.s32.totalorder %s20, 2
      %p106 = por %p104, %p105
      %p108 = scmp.ne.s32.totalorder %s93, %s107
      %p109 = scmp.eq.s32.totalorder %s20, 0
      %p110 = por %p108, %p109
      %s112 = sadd.s32 %s111, 1
      %p115 = scmp.eq.s32.totalorder %s14, 2
      %p116 = scmp.ne.s32.totalorder %s111, %s113
      %p117 = scmp.eq.s32.totalorder %s14, 0
      %p118 = por %p116, %p117
      %p119 = scmp.ne.s32.totalorder %s111, %s113
      %p120 = scmp.eq.s32.totalorder %s19, 2
      %p121 = por %p119, %p120
      %p122 = scmp.ne.s32.totalorder %s113, %s114
      %p123 = scmp.eq.s32.totalorder %s19, 0
      %p124 = por %p122, %p123
      %p125 = scmp.ne.s32.totalorder %s113, %s114
      %p126 = scmp.eq.s32.totalorder %s20, 2
      %p127 = por %p125, %p126
      %p129 = scmp.ne.s32.totalorder %s114, %s128
      %p130 = scmp.eq.s32.totalorder %s20, 0
      %p131 = por %p129, %p130
      %s132 = ssub.s32 %s14, %s21
      %p133 = scmp.eq.s32.totalorder %s132, 0
      %s135 = sadd.s32 %s134, 1
      %s136 = scalar_select %p133, %s134, %s135
      %p139 = pneg %p133
      %p140 = scmp.eq.s32.totalorder %s14, 2
      %p141 = por %p139, %p140
      %p142 = scmp.ne.s32.totalorder %s134, %s137
      %p143 = scmp.eq.s32.totalorder %s14, 0
      %p144 = por %p142, %p143
      %p145 = scmp.ne.s32.totalorder %s134, %s137
      %p146 = scmp.eq.s32.totalorder %s19, 2
      %p147 = por %p145, %p146
      %p148 = scmp.ne.s32.totalorder %s137, %s138
      %p149 = scmp.eq.s32.totalorder %s19, 0
      %p150 = por %p148, %p149
      %p151 = scmp.ne.s32.totalorder %s137, %s138
      %p152 = scmp.eq.s32.totalorder %s20, 2
      %p153 = por %p151, %p152
      %p155 = scmp.ne.s32.totalorder %s138, %s154
      %p156 = scmp.eq.s32.totalorder %s20, 0
      %p157 = por %p155, %p156
      %p158 = scmp.le.s32.totalorder 1, %s14
      %p159 = scmp.lt.s32.totalorder %s14, 4
      %p160 = pnand %p158, %p159
      %p161 = pneg %p160
      // Predicated region
      $region9: #{edge_model_forward.1} parent=5 // pred_check
        _
      $region10: #{edge_model_forward.1} parent=5 // pred_check_branch
        %163 = sbr.rel (%p160) target = $region12
      $region11: #{edge_model_forward.1} parent=5 // pred_region
        %s164 = ssub.s32 %s14, 1
        // Predicated region
        $region13: #{edge_model_forward.1} parent=11 // pred_check
          %p165 = pneg %p61
        $region14: #{edge_model_forward.1} parent=11 // pred_check_branch
          %167 = sbr.rel (%p165) target = $region16
        $region15: #{edge_model_forward.1} parent=11 // pred_region
          _
        $region16: #{edge_model_forward.1} parent=11 // pred_fallthru
          _
        // Predicated region
        $region17: #{edge_model_forward.1} parent=11 // pred_check
          %p168 = pneg %p82
        $region18: #{edge_model_forward.1} parent=11 // pred_check_branch
          %170 = sbr.rel (%p168) target = $region20
        $region19: #{edge_model_forward.1} parent=11 // pred_region
          _
        $region20: #{edge_model_forward.1} parent=11 // pred_fallthru
          _
        // Predicated region
        $region21: #{edge_model_forward.1} parent=11 // pred_check
          %p171 = pneg %p103
        $region22: #{edge_model_forward.1} parent=11 // pred_check_branch
          %173 = sbr.rel (%p171) target = $region24
        $region23: #{edge_model_forward.1} parent=11 // pred_region
          _
        $region24: #{edge_model_forward.1} parent=11 // pred_fallthru
          _
        // Predicated region
        $region25: #{edge_model_forward.1} parent=11 // pred_check
          %p174 = pneg %p124
        $region26: #{edge_model_forward.1} parent=11 // pred_check_branch
          %176 = sbr.rel (%p174) target = $region28
        $region27: #{edge_model_forward.1} parent=11 // pred_region
          _
        $region28: #{edge_model_forward.1} parent=11 // pred_fallthru
          _
      $region12: #{edge_model_forward.1} parent=5 // pred_fallthru
        _
      %p177 = scmp.lt.s32.totalorder %s14, 3
      // Predicated region
      $region29: #{edge_model_forward.1} parent=5 // pred_check
        %p178 = pneg %p177
      $region30: #{edge_model_forward.1} parent=5 // pred_check_branch
        %180 = sbr.rel (%p178) target = $region32
      $region31: #{edge_model_forward.1} parent=5 // pred_region
        // Predicated region
        $region33: #{edge_model_forward.1} parent=31 // pred_check
          %p181 = pneg %p34
        $region34: #{edge_model_forward.1} parent=31 // pred_check_branch
          %183 = sbr.rel (%p181) target = $region36
        $region35: #{edge_model_forward.1} parent=31 // pred_region
          %s184 = sand.u32 %s24, 1
          %s185 = sand.u32 %s24, 1
          %s186 = smul.addr %s185, 16
          %s187 = scalar_lea.vmem [#allocation2], %s186
          %s188 = smul.addr %s14, 8
          %s189 = scalar_lea.vmem %s0, %s188
          // Predicated region
          $region37: #{edge_model_forward.1} parent=35 // pred_check
            _
          $region38: #{edge_model_forward.1} parent=35 // pred_check_branch
            %191 = sbr.rel (0) target = $region40
          $region39: #{edge_model_forward.1} parent=35 // pred_region
            // Predicated region
            $region41: #{edge_model_forward.1} parent=39 // pred_check
              _
            $region42: #{edge_model_forward.1} parent=39 // pred_check_branch
              %193 = sbr.rel (0) target = $region44
            $region43: #{edge_model_forward.1} parent=39 // pred_region
              // Predicated region
              $region56: #{edge_model_forward.1} parent=43 // pred_check
                _
              $region57: #{edge_model_forward.1} parent=43 // pred_check_branch
                %211 = sbr.rel (0) target = $region59
              $region58: #{edge_model_forward.1} parent=43 // pred_region
                loop: start=0, step=1, limit=1
                $region60: #{edge_model_forward.1} parent=58 // loop_pre_header
                  _
                $region61: #{edge_model_forward.1} parent=58 // loop_header
                  %s213 = sphi 0, %s217
                  %p214 = scmp.ge.s32.totalorder %s213, 1
                  %s218 = sphi %s189, %s189
                  %s219 = sphi %s187, %s187
                $region62: #{edge_model_forward.1} parent=58 // loop_header_branch
                  %216 = sbr.rel (%p214) target = $region66
                $region63: #{edge_model_forward.1} parent=58 // loop_body
                  %v220 = vld [vmem:[%s218] sm:$0xff]
                  %221 = vst [vmem:[%s219] sm:$0xff] %v220
                  %v222 = vld [vmem:[%s218 + $0x18] sm:$0xff]
                  %223 = vst [vmem:[%s219 + $0x8] sm:$0xff] %v222
                $region64: #{edge_model_forward.1} parent=58 // loop_footer
                  %s217 = sadd.s32 1, %s213
                $region65: #{edge_model_forward.1} parent=58 // loop_footer_branch
                  %212 = sbr.rel target = $region61
                $region66: #{edge_model_forward.1} parent=58 // loop_exit
                  _
              $region59: #{edge_model_forward.1} parent=43 // pred_fallthru
                _
              // Predicated region
              $region67: #{edge_model_forward.1} parent=43 // pred_check
                _
              $region68: #{edge_model_forward.1} parent=43 // pred_check_branch
                %225 = sbr.rel target = $region70
              $region69: #{edge_model_forward.1} parent=43 // pred_region
                _
              $region70: #{edge_model_forward.1} parent=43 // pred_fallthru
                _
            $region44: #{edge_model_forward.1} parent=39 // pred_fallthru
              _
            // Predicated region
            $region45: #{edge_model_forward.1} parent=39 // pred_check
              _
            $region46: #{edge_model_forward.1} parent=39 // pred_check_branch
              %195 = sbr.rel target = $region48
            $region47: #{edge_model_forward.1} parent=39 // pred_region
              %s197 = ssub.s32 256, 1
              loop: start=0, step=1, limit=1
              $region49: #{edge_model_forward.1} parent=47 // loop_pre_header
                _
              $region50: #{edge_model_forward.1} parent=47 // loop_header
                %s199 = sphi 0, %s203
                %p200 = scmp.ge.s32.totalorder %s199, 1
                %s204 = sphi %s189, %s189
                %s205 = sphi %s187, %s187
              $region51: #{edge_model_forward.1} parent=47 // loop_header_branch
                %202 = sbr.rel (%p200) target = $region55
              $region52: #{edge_model_forward.1} parent=47 // loop_body
                %v206 = vld [vmem:[%s204] sm:%s197]
                %207 = vst [vmem:[%s205] sm:%s197] %v206
                %v208 = vld [vmem:[%s204 + $0x18] sm:%s197]
                %209 = vst [vmem:[%s205 + $0x8] sm:%s197] %v208
              $region53: #{edge_model_forward.1} parent=47 // loop_footer
                %s203 = sadd.s32 1, %s199
              $region54: #{edge_model_forward.1} parent=47 // loop_footer_branch
                %198 = sbr.rel target = $region50
              $region55: #{edge_model_forward.1} parent=47 // loop_exit
                _
            $region48: #{edge_model_forward.1} parent=39 // pred_fallthru
              _
          $region40: #{edge_model_forward.1} parent=35 // pred_fallthru
            _
          %226 = vnop
        $region36: #{edge_model_forward.1} parent=31 // pred_fallthru
          _
      $region32: #{edge_model_forward.1} parent=5 // pred_fallthru
        _
      %p227 = scmp.le.s32.totalorder 1, %s14
      %p228 = scmp.lt.s32.totalorder %s14, 4
      %p229 = pnand %p227, %p228
      %p230 = pneg %p229
      // Predicated region
      $region71: #{edge_model_forward.1} parent=5 // pred_check
        _
      $region72: #{edge_model_forward.1} parent=5 // pred_check_branch
        %232 = sbr.rel (%p229) target = $region74
      $region73: #{edge_model_forward.1} parent=5 // pred_region
        %s233 = ssub.s32 %s14, 1
        %s234 = sand.u32 %s27, 1
        %s235 = sand.u32 %s27, 1
        %s236 = smul.addr %s235, 16
        %s237 = scalar_lea.vmem [#allocation2], %s236
        // Predicated region
        $region75: #{edge_model_forward.1} parent=73 // pred_check
          %p238 = pneg %p40
        $region76: #{edge_model_forward.1} parent=73 // pred_check_branch
          %240 = sbr.rel (%p238) target = $region78
        $region77: #{edge_model_forward.1} parent=73 // pred_region
          _
        $region78: #{edge_model_forward.1} parent=73 // pred_fallthru
          _
        %s241 = sand.u32 %s27, 1
        %s242 = sand.u32 %s27, 1
        %s243 = smul.addr %s242, 16
        %s244 = scalar_lea.vmem [#allocation2], %s243
        %p245 = pneg %p40
        %p246 = pneg %p37
        %p247 = pneg %p61
        %p248 = pneg %p58
        %p249 = pneg %p82
        %p250 = pneg %p79
        %p251 = pneg %p103
        %p252 = pneg %p100
        %p253 = pneg %p124
        %p254 = pneg %p121
        %p255 = pneg %p150
        %p256 = pneg %p147
        %s257 = sand.u32 %s137, 1
        %s258 = scalar_lea.sflag [#allocation4], %s257
        %s259 = sand.u32 %s137, 1
        %s260 = smul.addr %s259, 4
        %s261 = scalar_lea.vmem [#allocation3], %s260
        %v263 = vld [vmem:[%s237] sm:$0xff]
        %v264 = vld [vmem:[%s237 + $0x8] sm:$0xf]
        %v265 = vpack.c.bf16 %v264, %v263
        %v266 = vld [vmem:[%s1] sm:$0xf]
        %v267 = vld [vmem:[%s1 + $0x4] sm:$0xf]
        %v268 = vld [vmem:[%s1 + $0x8] sm:$0xf]
        %v269 = vld [vmem:[%s1 + $0xc] sm:$0xf]
        %v270 = vld [vmem:[%s2] sm:$0xff]
        %v271 = vld [vmem:[%s2 + $0x8] sm:$0xff]
        %v272 = vld [vmem:[%s2 + $0x10] sm:$0xff]
        %v273 = vld [vmem:[%s2 + $0x18] sm:$0xff]
        %275 = vset.pattern.permute.xlu0 0
        %276 = vperm.xlu0 %275, %v270
        %v277 = vpop.permute.xlu0 %276
        %280 = vset.pattern.permute.xlu0 0
        %281 = vperm.xlu0 %280, %v271
        %v282 = vpop.permute.xlu0 %281
        %285 = vset.pattern.permute.xlu0 0
        %286 = vperm.xlu0 %285, %v272
        %v287 = vpop.permute.xlu0 %286
        %290 = vset.pattern.permute.xlu0 0
        %291 = vperm.xlu0 %290, %v273
        %v292 = vpop.permute.xlu0 %291
        %v298 = vunpack.c.l.b16 %v266
        %v299 = vunpack.c.l.b16 %v267
        %v300 = vunpack.c.l.b16 %v268
        %v301 = vunpack.c.l.b16 %v269
        %v302 = vpack.c.b16 %v299, %v298
        %v303 = vpack.c.b16 %v301, %v300
        %vm304 = vcmask 97280
        %v306 = vsel %vm304, %v302, 0
        %v309 = vsel %vm304, %v303, 0
        %vm311 = vcmask 1045504
        %v313 = vsel %vm311, %v265, 0
        %315 = vmatprep.subr.bf16.mxu0 0
        %316 = vmatpush1.bf16.msra.mxu0 0
        %317 = vmatprep.subr.bf16.mxu0 0
        %318 = vmatpush1.bf16.msra.mxu0 0
        %319 = vmatprep.subr.bf16.mxu0 0
        %320 = vmatpush1.bf16.msra.mxu0 0
        %321 = vmatprep.subr.bf16.mxu0 0
        %322 = vmatpush1.bf16.msra.mxu0 0
        %323 = vmatprep.subr.bf16.mxu0 0
        %324 = vmatpush1.bf16.msra.mxu0 0
        %325 = vmatprep.subr.bf16.mxu0 0
        %326 = vmatpush1.bf16.msra.mxu0 0
        %327 = vmatprep.subr.bf16.mxu0 0
        %328 = vmatpush1.bf16.msra.mxu0 0
        %329 = vmatprep.subr.bf16.mxu0 0
        %330 = vmatpush1.bf16.msra.mxu0 %v313
        %331 = vmatprep.subr.bf16.mxu0 0
        %332 = vmatpush2.bf16.msra.mxu0 0
        %333 = vmatprep.subr.bf16.mxu0 0
        %334 = vmatpush2.bf16.msra.mxu0 0
        %335 = vmatprep.subr.bf16.mxu0 0
        %336 = vmatpush2.bf16.msra.mxu0 0
        %337 = vmatprep.subr.bf16.mxu0 0
        %338 = vmatpush2.bf16.msra.mxu0 0
        %339 = vmatprep.subr.bf16.mxu0 0
        %340 = vmatpush2.bf16.msra.mxu0 0
        %341 = vmatprep.subr.bf16.mxu0 0
        %342 = vmatpush2.bf16.msra.mxu0 0
        %343 = vmatprep.subr.bf16.mxu0 0
        %344 = vmatpush2.bf16.msra.mxu0 0
        %345 = vmatprep.subr.bf16.mxu0 0
        %346 = vmatpush2.bf16.msra.mxu0 0
        %347 = vmatprep.mubr.bf16.mxu0 0
        %348 = vmatmul.mubr.bf16.gmra.mxu0 %v306
        %v349 = vpop.f32.mrf.mxu0
        %v350 = vadd.f32 %v277, %v349
        %v351 = vpop.f32.mrf.mxu0
        %v352 = vpop.f32.mrf.mxu0
        %v353 = vadd.f32 %v282, %v352
        %v354 = vpop.f32.mrf.mxu0
        %355 = vmatprep.mubr.bf16.mxu0 0
        %356 = vmatmul.mubr.bf16.gmra.mxu0 %v309
        %v357 = vpop.f32.mrf.mxu0
        %v358 = vadd.f32 %v287, %v357
        %v359 = vpop.f32.mrf.mxu0
        %v360 = vpop.f32.mrf.mxu0
        %v361 = vadd.f32 %v292, %v360
        %v362 = vpop.f32.mrf.mxu0
        %363 = vdwg.mxu0
        %v364 = vmax.f32 %v350, 0.0
        %v365 = vmax.f32 %v353, 0.0
        %v366 = vmax.f32 %v358, 0.0
        %v367 = vmax.f32 %v361, 0.0
        %v368 = vld [vmem:[%s3] sm:$0x3]
        %v369 = vpack.c.bf16 %v365, %v364
        %v370 = vpack.c.bf16 %v367, %v366
        %v371 = vld [vmem:[%s4] sm:$0xf]
        %373 = vset.pattern.permute.xlu0 0
        %374 = vperm.xlu0 %373, %v371
        %v375 = vpop.permute.xlu0 %374
        %vm377 = vcmask 261120
        %v379 = vsel %vm377, %v368, 0
        %381 = vmatprep.subr.bf16.mxu0 0
        %382 = vmatpush1.bf16.msra.mxu0 0
        %383 = vmatprep.subr.bf16.mxu0 0
        %384 = vmatpush1.bf16.msra.mxu0 0
        %385 = vmatprep.subr.bf16.mxu0 0
        %386 = vmatpush1.bf16.msra.mxu0 0
        %387 = vmatprep.subr.bf16.mxu0 0
        %388 = vmatpush1.bf16.msra.mxu0 0
        %389 = vmatprep.subr.bf16.mxu0 0
        %390 = vmatpush1.bf16.msra.mxu0 0
        %391 = vmatprep.subr.bf16.mxu0 0
        %392 = vmatpush1.bf16.msra.mxu0 0
        %393 = vmatprep.subr.bf16.mxu0 0
        %394 = vmatpush1.bf16.msra.mxu0 %v370
        %395 = vmatprep.subr.bf16.mxu0 0
        %396 = vmatpush1.bf16.msra.mxu0 %v369
        %397 = vmatprep.subr.bf16.mxu0 0
        %398 = vmatpush2.bf16.msra.mxu0 0
        %399 = vmatprep.subr.bf16.mxu0 0
        %400 = vmatpush2.bf16.msra.mxu0 0
        %401 = vmatprep.subr.bf16.mxu0 0
        %402 = vmatpush2.bf16.msra.mxu0 0
        %403 = vmatprep.subr.bf16.mxu0 0
        %404 = vmatpush2.bf16.msra.mxu0 0
        %405 = vmatprep.subr.bf16.mxu0 0
        %406 = vmatpush2.bf16.msra.mxu0 0
        %407 = vmatprep.subr.bf16.mxu0 0
        %408 = vmatpush2.bf16.msra.mxu0 0
        %409 = vmatprep.subr.bf16.mxu0 0
        %410 = vmatpush2.bf16.msra.mxu0 0
        %411 = vmatprep.subr.bf16.mxu0 0
        %412 = vmatpush2.bf16.msra.mxu0 0
        %413 = vmatprep.mubr.bf16.mxu0 0
        %414 = vmatmul.mubr.bf16.gmra.mxu0 %v379
        %v415 = vpop.f32.mrf.mxu0
        %v416 = vadd.f32 %v375, %v415
        %v417 = vpop.f32.mrf.mxu0
        %v418 = vpop.f32.mrf.mxu0
        %v419 = vpop.f32.mrf.mxu0
        %420 = vdwg.mxu0
        %v421 = vadd.f32 %v416, %v264
        %422 = vst [vmem:[%s261] sm:$0xf] %v421
        %s423 = sand.u32 %s137, 1
        %s424 = scalar_lea.sflag [#allocation4], %s423
        %s425 = sand.u32 %s137, 1
        %s426 = smul.addr %s425, 4
        %s427 = scalar_lea.vmem [#allocation3], %s426
        // Predicated region
        $region79: #{edge_model_forward.1} parent=73 // pred_check
          %p428 = pneg %p147
        $region80: #{edge_model_forward.1} parent=73 // pred_check_branch
          %430 = sbr.rel (%p428) target = $region82
        $region81: #{edge_model_forward.1} parent=73 // pred_region
          %s432 = ssub.s32 64, 64
          %433 = vsyncadd %s424, %s432
          %s434 = smul.addr %s19, 64
          %s435 = scalar_lea.hbm %s5, %s434
          %s437 = sshll.u32 %s427, 4
          %s438 = int_to_ptr.vmem [resolvable:$true] %s437
          %440 = dma.vmem_to_hbm [thread:$0]  %s438, 64, %s435, %s424
        $region82: #{edge_model_forward.1} parent=73 // pred_fallthru
          _
      $region74: #{edge_model_forward.1} parent=5 // pred_fallthru
        _
      %p441 = scmp.le.s32.totalorder 2, %s14
      // Predicated region
      $region83: #{edge_model_forward.1} parent=5 // pred_check
        %p442 = pneg %p441
      $region84: #{edge_model_forward.1} parent=5 // pred_check_branch
        %444 = sbr.rel (%p442) target = $region86
      $region85: #{edge_model_forward.1} parent=5 // pred_region
        %s445 = ssub.s32 %s14, 2
        // Predicated region
        $region87: #{edge_model_forward.1} parent=85 // pred_check
          %p446 = pneg %p153
        $region88: #{edge_model_forward.1} parent=85 // pred_check_branch
          %448 = sbr.rel (%p446) target = $region90
        $region89: #{edge_model_forward.1} parent=85 // pred_region
          %s449 = sand.u32 %s138, 1
          %s450 = scalar_lea.sflag [#allocation4], %s449
          %s451 = sand.u32 %s138, 1
          %s452 = smul.addr %s451, 4
          %s453 = scalar_lea.vmem [#allocation3], %s452
          %454 = dma.done %s450, 64
        $region90: #{edge_model_forward.1} parent=85 // pred_fallthru
          _
      $region86: #{edge_model_forward.1} parent=5 // pred_fallthru
        _
    $region6: #{edge_model_forward.1} parent=1 // loop_footer
      %s18 = sadd.s32 1, %s14
    $region7: #{edge_model_forward.1} parent=1 // loop_footer_branch
      %13 = sbr.rel target = $region3
    $region8: #{edge_model_forward.1} parent=1 // loop_exit
      _
    %455 = vsyncpa [#allocation4], 1
    %s456 = scalar_lea.sflag [#allocation4], 1
    %457 = vsyncpa %s456, 1

</llo_original>
